<compile_context>
chip_gen: v7x
topology: tpu7x:2x2x1
jax: 0.10.0
libtpu: 0.0.40
codegen_flags: <defaults>
</compile_context>

<pallas_src>
import math

import jax
import jax.numpy as jnp
from jax import lax
from jax.experimental import pallas as pl
from jax.experimental.pallas import tpu as pltpu

_LANE = 128
_SUBLANE = 8
_EPS = 1e-5  # BatchNorm2d eps


def _round_up(x, m):
    return ((x + m - 1) // m) * m


# ---------------------------------------------------------------------------- kernels

def _mm_kernel_single(act):
    """o = act(A @ W + shift) — single contraction step, no scratch accumulator."""

    def kernel(a_ref, w_ref, t_ref, o_ref):
        y = jnp.dot(a_ref[0], w_ref[0], preferred_element_type=jnp.float32)
        y = y + t_ref[...]                       # folded conv-bias + BN shift (f32)
        if act == "relu":
            y = jnp.maximum(y, 0.0)
        elif act == "sigmoid":
            y = jax.nn.sigmoid(y)
        o_ref[0] = y.astype(o_ref.dtype)

    return kernel


def _mm_kernel_multi(act):
    """o = act(sum_k A_k @ W_k + shift) — f32 VMEM accumulator over the K grid axis."""

    def kernel(a_ref, w_ref, t_ref, o_ref, acc_ref):
        k = pl.program_id(2)

        @pl.when(k == 0)
        def _init():
            acc_ref[...] = jnp.zeros_like(acc_ref)

        acc_ref[...] += jnp.dot(a_ref[0], w_ref[0],
                                preferred_element_type=jnp.float32)

        @pl.when(k == pl.num_programs(2) - 1)
        def _finalize():
            y = acc_ref[...] + t_ref[...]
            if act == "relu":
                y = jnp.maximum(y, 0.0)
            elif act == "sigmoid":
                y = jax.nn.sigmoid(y)
            o_ref[0] = y.astype(o_ref.dtype)

    return kernel


def mm_affine(A, W, shift, act="none", tm_max=512):
    """A: (P, M, K), W: (P, K, C), shift: (C,) -> act(A @ W + shift) : (P, M, C) f32.

    bf16 MXU operands, f32 accumulation & epilogue, lane-dense (128-mult) output,
    M tiling and adaptive K tiling.
    """
    P, M, K = A.shape
    C = W.shape[-1]

    # --- lane-dense output: pad Cout to a multiple of 128 (slice after the call).
    Cp = _round_up(max(C, 1), _LANE)
    if Cp != C:
        W = jnp.pad(W, ((0, 0), (0, 0), (0, Cp - C)))
        shift = jnp.pad(shift, ((0, Cp - C),))

    # --- pad K to a sublane multiple (only bayar K=25 hits this).
    Kp = _round_up(K, _SUBLANE)
    if Kp != K:
        A = jnp.pad(A, ((0, 0), (0, 0), (0, Kp - K)))
        W = jnp.pad(W, ((0, 0), (0, Kp - K), (0, 0)))
        K = Kp

    # --- row (M) tiling: tm <= 512, multiple of 8; pad M up to a tile multiple.
    tm = min(tm_max, _round_up(M, _SUBLANE))
    Mp = _round_up(M, tm)
    if Mp != M:
        A = jnp.pad(A, ((0, 0), (0, Mp - M), (0, 0)))

    # --- adaptive K tiling: single fat step when possible, else 2048/1024/... tiles.
    if K <= 2048:
        tk = K
    else:
        tk = next(t for t in (2048, 1024, 512, 256, 128) if K % t == 0)
    n_m, n_k = Mp // tm, K // tk

    # bf16 MXU feed (keep accumulator + epilogue f32 — v5e has no bf16 VPU/EUP).
    A = A.astype(jnp.bfloat16)
    W = W.astype(jnp.bfloat16)
    t2 = shift.reshape(1, Cp).astype(jnp.float32)

    # Explicit scoped-VMEM budget: double-buffered A/W/out tiles + f32 accumulator.
    # Clamped to 64 MiB (v7x physical VMEM); tiles above keep actual use << that.
    vmem_bytes = (2 * tm * tk * 2 + 2 * tk * Cp * 2 + 2 * tm * Cp * 4
                  + tm * Cp * 4 + 2 * Cp * 4) + (2 << 20)
    vmem_bytes = int(min(max(vmem_bytes, 16 << 20), 64 << 20))

    if n_k == 1:
        out = pl.pallas_call(
            _mm_kernel_single(act),
            out_shape=jax.ShapeDtypeStruct((P, Mp, Cp), jnp.float32),
            grid_spec=pltpu.PrefetchScalarGridSpec(
                num_scalar_prefetch=0,
                grid=(P, n_m),
                in_specs=[
                    pl.BlockSpec((1, tm, K), lambda p, m: (p, m, 0)),
                    pl.BlockSpec((1, K, Cp), lambda p, m: (p, 0, 0)),
                    pl.BlockSpec((1, Cp), lambda p, m: (0, 0)),
                ],
                out_specs=pl.BlockSpec((1, tm, Cp), lambda p, m: (p, m, 0)),
            ),
            compiler_params=pltpu.CompilerParams(
                dimension_semantics=("parallel", "parallel"),
                vmem_limit_bytes=vmem_bytes),
        )(A, W, t2)
    else:
        out = pl.pallas_call(
            _mm_kernel_multi(act),
            out_shape=jax.ShapeDtypeStruct((P, Mp, Cp), jnp.float32),
            grid_spec=pltpu.PrefetchScalarGridSpec(
                num_scalar_prefetch=0,
                grid=(P, n_m, n_k),
                in_specs=[
                    pl.BlockSpec((1, tm, tk), lambda p, m, k: (p, m, k)),
                    pl.BlockSpec((1, tk, Cp), lambda p, m, k: (p, k, 0)),
                    pl.BlockSpec((1, Cp), lambda p, m, k: (0, 0)),
                ],
                out_specs=pl.BlockSpec((1, tm, Cp), lambda p, m, k: (p, m, 0)),
                scratch_shapes=[pltpu.VMEM((tm, Cp), jnp.float32)],
            ),
            compiler_params=pltpu.CompilerParams(
                dimension_semantics=("parallel", "parallel", "arbitrary"),
                vmem_limit_bytes=vmem_bytes),
        )(A, W, t2)

    if Mp != M or Cp != C:
        out = out[:, :M, :C]
    return out


# ------------------------------------------------- ConvTranspose2d(k=4, s=2, p=1) glue
# output[2m+po, 2n+pw] = sum over 2x2 input taps; taps/kernel-indices per parity:
_TAP = {0: ((0, 1), (-1, 3)),   # even output rows: (input shift, kernel index)
        1: ((0, 2), (1, 0))}    # odd output rows


def convT_im2col(x):  # x: (N, H, W, Cin) -> (4, N*H*W, 4*Cin) in bf16
    N, H, W, C = x.shape
    xp = jnp.pad(x.astype(jnp.bfloat16), ((0, 0), (1, 1), (1, 1), (0, 0)))
    mats = []
    for po in (0, 1):
        for pw in (0, 1):
            taps = []
            for sh, _ in _TAP[po]:
                for sw, _ in _TAP[pw]:
                    taps.append(xp[:, 1 + sh:1 + sh + H, 1 + sw:1 + sw + W, :])
            mats.append(jnp.concatenate(taps, axis=-1).reshape(N * H * W, 4 * C))
    return jnp.stack(mats, axis=0)


def convT_weight(Wt):  # Wt: (Cin, Cout, 4, 4) -> (4, 4*Cin, Cout)
    mats = []
    for po in (0, 1):
        for pw in (0, 1):
            subs = []
            for _, kh in _TAP[po]:
                for _, kw in _TAP[pw]:
                    subs.append(Wt[:, :, kh, kw])
            mats.append(jnp.concatenate(subs, axis=0))
    return jnp.stack(mats, axis=0)


def interleave_parity(Y, N, H, W):  # (4, N*H*W, C) -> (N, 2H, 2W, C)
    # TODO(synk): this parity interleave is still an XLA transpose in HBM; folding it
    # into the next layer's im2col (sub-pixel indexing) would remove the round trip.
    C = Y.shape[-1]
    Y = Y.reshape(2, 2, N, H, W, C)
    return jnp.transpose(Y, (2, 3, 0, 4, 1, 5)).reshape(N, 2 * H, 2 * W, C)


def deconv_layer(x_nhwc, Wt, bias, gamma=None, beta=None, act="relu"):
    N, H, W, _ = x_nhwc.shape
    A = convT_im2col(x_nhwc)                       # (4, N*H*W, 4*Cin) bf16
    Wp = convT_weight(Wt)                          # (4, 4*Cin, Cout)  f32
    if gamma is not None:
        # TODO(synk): BatchNorm2d is implemented in eval mode (init running stats
        # mean=0, var=1); training-mode batch statistics are not computed.
        scale = gamma / jnp.sqrt(1.0 + _EPS)
        Wp = Wp * scale[None, None, :]             # fold BN scale into the weights
        shift = bias * scale + beta                # fold conv-bias + BN shift
    else:
        shift = bias
    Y = mm_affine(A, Wp, shift, act=act)           # (4, N*H*W, Cout) f32
    return interleave_parity(Y, N, H, W)


# ------------------------------------------------------------------ Bayar / rgb2gray

def rgb2gray_nchw(x):  # matches torch code: b, g, r = x[:,0], x[:,1], x[:,2]
    b, g, r = x[:, 0], x[:, 1], x[:, 2]
    return (0.2989 * r + 0.587 * g + 0.114 * b)[:, None]  # (N,1,H,W)


def bayar_real_kernel(kern):  # kern: (1, 3, 24) -> (3, 1, 5, 5)
    kern = kern / jnp.sum(kern, axis=2, keepdims=True)
    minus1 = -jnp.ones((1, 3, 1), jnp.float32)
    rk = jnp.concatenate([kern[:, :, :12], minus1, kern[:, :, 12:]], axis=2)
    return rk.reshape(3, 1, 5, 5)


def bayar_conv(gray_nhwc, rk):  # 1->3 channels, k=5, stride=1, padding=2
    N, H, W, _ = gray_nhwc.shape
    gp = jnp.pad(gray_nhwc.astype(jnp.bfloat16), ((0, 0), (2, 2), (2, 2), (0, 0)))
    taps = [gp[:, kh:kh + H, kw:kw + W, 0] for kh in range(5) for kw in range(5)]
    A = jnp.stack(taps, axis=-1).reshape(1, N * H * W, 25)
    Wm = rk.reshape(3, 25).T.reshape(1, 25, 3)
    Y = mm_affine(A, Wm, jnp.zeros((3,), jnp.float32), act="none")
    return Y.reshape(N, H, W, 3)


# --------------------------------------------------------------------- encoder stand-in
# TODO(synk): the timm pretrained backbone (encoder.stem / encoder.stages) is not
# translatable in-script; replaced by a deterministic stride-32 patchify + linear
# stand-in producing the (N, 1024, H/32, W/32) latent expected by the mask decoder.
def encoder_standin(x_nhwc, We, be):
    N, H, W, C = x_nhwc.shape
    h, w = H // 32, W // 32
    p = x_nhwc.astype(jnp.bfloat16).reshape(N, h, 32, w, 32, C)
    p = jnp.transpose(p, (0, 1, 3, 2, 4, 5)).reshape(1, N * h * w, 32 * 32 * C)
    Y = mm_affine(p, We.reshape(1, 32 * 32 * C, 1024), be, act="relu")
    return Y.reshape(N, h, w, 1024)


# --------------------------------------------------------------------------- forward

def mask_estimator_forward(x_nchw, params, image_size, use_bayar=True):
    N = x_nchw.shape[0]
    assert x_nchw.shape == (N, 3, image_size[0], image_size[1])
    if use_bayar:
        gray = jnp.transpose(rgb2gray_nchw(x_nchw), (0, 2, 3, 1))        # (N,H,W,1)
        feat = bayar_conv(gray, bayar_real_kernel(params["bayar_kernel"]))
    else:
        feat = jnp.transpose(x_nchw, (0, 2, 3, 1))
    y = encoder_standin(feat, params["enc_w"], params["enc_b"])          # (N,H/32,W/32,1024)

    for i in range(4):
        y = deconv_layer(y, params[f"dec{i}_w"], params[f"dec{i}_b"],
                         gamma=params[f"dec{i}_gamma"], beta=params[f"dec{i}_beta"],
                         act="relu")
    y = deconv_layer(y, params["dec4_w"], params["dec4_b"], act="sigmoid")
    mask = jnp.transpose(y, (0, 3, 1, 2))                                # NCHW
    assert mask.shape == (N, 1, image_size[0], image_size[1])
    return mask


# -------------------------------------------------------------------- pure-JAX reference

def ref_forward(x_nchw, params, use_bayar=True):
    x = x_nchw
    if use_bayar:
        g = rgb2gray_nchw(x)
        rk = bayar_real_kernel(params["bayar_kernel"])
        x = lax.conv_general_dilated(g, rk, (1, 1), [(2, 2), (2, 2)],
                                     dimension_numbers=("NCHW", "OIHW", "NCHW"))
    xh = jnp.transpose(x, (0, 2, 3, 1))
    N, H, W, C = xh.shape
    h, w = H // 32, W // 32
    p = jnp.transpose(xh.reshape(N, h, 32, w, 32, C),
                      (0, 1, 3, 2, 4, 5)).reshape(N * h * w, 32 * 32 * C)
    lat = jnp.maximum(p @ params["enc_w"] + params["enc_b"], 0.0).reshape(N, h, w, 1024)
    y = jnp.transpose(lat, (0, 3, 1, 2))
    for i in range(5):
        Wt = params[f"dec{i}_w"]
        Wf = jnp.transpose(Wt[:, :, ::-1, ::-1], (1, 0, 2, 3))
        y = lax.conv_general_dilated(y, Wf, (1, 1), [(2, 2), (2, 2)],
                                     lhs_dilation=(2, 2),
                                     dimension_numbers=("NCHW", "OIHW", "NCHW"))
        y = y + params[f"dec{i}_b"][None, :, None, None]
        if i < 4:
            y = (params[f"dec{i}_gamma"][None, :, None, None] * (y / jnp.sqrt(1.0 + _EPS))
                 + params[f"dec{i}_beta"][None, :, None, None])
            y = jnp.maximum(y, 0.0)
        else:
            y = jax.nn.sigmoid(y)
    return y


# ---------------------------------------------------------------------------- params

def init_params(key):
    ks = jax.random.split(key, 16)
    params = {"bayar_kernel": jax.random.uniform(ks[0], (1, 3, 24), jnp.float32)}
    k_enc = 32 * 32 * 3
    params["enc_w"] = jax.random.normal(ks[1], (k_enc, 1024), jnp.float32) * math.sqrt(2.0 / k_enc)
    params["enc_b"] = jnp.zeros((1024,), jnp.float32)
    chans_in = [1024, 512, 256, 128, 64]
    chans_out = [512, 256, 128, 64, 1]
    for i, (ci, co) in enumerate(zip(chans_in, chans_out)):
        params[f"dec{i}_w"] = (jax.random.normal(ks[2 + 2 * i], (ci, co, 4, 4), jnp.float32)
                               * (2.0 / math.sqrt(ci * 16)))
        params[f"dec{i}_b"] = jax.random.normal(ks[3 + 2 * i], (co,), jnp.float32) * 0.01
        if i < 4:
            params[f"dec{i}_gamma"] = jnp.ones((co,), jnp.float32)   # PyTorch BN default init
            params[f"dec{i}_beta"] = jnp.zeros((co,), jnp.float32)
    return params


if __name__ == "__main__":
    image_size = (64, 64)
    key = jax.random.PRNGKey(0)
    kp, kx = jax.random.split(key)
    params = init_params(kp)
    x = jax.random.normal(kx, (2, 3, image_size[0], image_size[1]), jnp.float32)

    mask = mask_estimator_forward(x, params, image_size, use_bayar=True)
    mask = jax.block_until_ready(mask)
    assert mask.shape == (2, 1, image_size[0], image_size[1])

    ref = jax.block_until_ready(ref_forward(x, params, use_bayar=True))
    max_err = float(jnp.max(jnp.abs(mask - ref)))
    # bf16 MXU operands (f32 accumulation/epilogue) vs an f32 XLA reference: a 2e-2
    # post-sigmoid tolerance leaves ample margin (observed errors are ~1e-3 level).
    assert jnp.allclose(mask, ref, atol=2e-2, rtol=2e-2), f"max abs err {max_err}"

    print("KERNEL_OK")
</pallas_src>

<mosaic_0001>
module attributes {stable_mosaic.version = 11 : i64} {
  func.func @kernel(%arg0: i32, %arg1: i32, %arg2: memref<1x512x32xbf16, #tpu.memory_space<vmem>>, %arg3: memref<1x32x128xbf16, #tpu.memory_space<vmem>>, %arg4: memref<1x128xf32, #tpu.memory_space<vmem>>, %arg5: memref<1x512x128xf32, #tpu.memory_space<vmem>>) attributes {dimension_semantics = [#tpu.dimension_semantics<parallel>, #tpu.dimension_semantics<parallel>], iteration_bounds = array<i64: 1, 16>, scalar_prefetch = 0 : i64, scratch_operands = 0 : i64, tpu.core_type = #tpu.core_type<tc>, window_params = [{transform_indices = @transform_0, window_bounds = array<i64: 1, 512, 32>}, {transform_indices = @transform_1, window_bounds = array<i64: 1, 32, 128>}, {pipeline_mode = #tpu.pipeline_mode<synchronous>, transform_indices = @transform_2, window_bounds = array<i64: 1, 128>}, {transform_indices = @transform_3, window_bounds = array<i64: 1, 512, 128>}]} {
    %c0 = arith.constant 0 : index
    %c0_0 = arith.constant 0 : index
    %c0_1 = arith.constant 0 : index
    %0 = vector.load %arg2[%c0, %c0_0, %c0_1] : memref<1x512x32xbf16, #tpu.memory_space<vmem>>, vector<1x512x32xbf16>
    %1 = vector.shape_cast %0 : vector<1x512x32xbf16> to vector<512x32xbf16>
    %c0_2 = arith.constant 0 : index
    %c0_3 = arith.constant 0 : index
    %c0_4 = arith.constant 0 : index
    %2 = vector.load %arg3[%c0_2, %c0_3, %c0_4] : memref<1x32x128xbf16, #tpu.memory_space<vmem>>, vector<1x32x128xbf16>
    %3 = vector.shape_cast %2 : vector<1x32x128xbf16> to vector<32x128xbf16>
    %cst = arith.constant dense<0.000000e+00> : vector<512x128xf32>
    %4 = tpu.matmul %1, %3, %cst {dimension_numbers = #tpu.dot_dimension_numbers<[1], [0], [0], [1], [0, 0, 1, 1], [], []>} : vector<512x32xbf16>, vector<32x128xbf16>, vector<512x128xf32> -> vector<512x128xf32>
    %c0_5 = arith.constant 0 : index
    %c0_6 = arith.constant 0 : index
    %5 = vector.load %arg4[%c0_5, %c0_6] : memref<1x128xf32, #tpu.memory_space<vmem>>, vector<1x128xf32>
    %6 = vector.broadcast %5 : vector<1x128xf32> to vector<512x128xf32>
    %7 = arith.addf %4, %6 : vector<512x128xf32>
    %c0_7 = arith.constant 0 : index
    %c0_8 = arith.constant 0 : index
    %c0_9 = arith.constant 0 : index
    %8 = vector.load %arg5[%c0_7, %c0_8, %c0_9] : memref<1x512x128xf32, #tpu.memory_space<vmem>>, vector<1x512x128xf32>
    %9 = vector.shape_cast %8 : vector<1x512x128xf32> to vector<512x128xf32>
    %10 = vector.shape_cast %7 : vector<512x128xf32> to vector<1x512x128xf32>
    tpu.vector_store %arg5[%c0_7, %c0_8, %c0_9], %10 {strides = array<i32>} : memref<1x512x128xf32, #tpu.memory_space<vmem>>, vector<1x512x128xf32>,
    return
  }
  func.func @transform_0(%arg0: i32, %arg1: i32) -> (i32, i32, i32) {
    %c0_i32 = arith.constant 0 : i32
    %c0_i32_0 = arith.constant 0 : i32
    return %arg0, %arg1, %c0_i32 : i32, i32, i32
  }
  func.func @transform_1(%arg0: i32, %arg1: i32) -> (i32, i32, i32) {
    %c0_i32 = arith.constant 0 : i32
    %c0_i32_0 = arith.constant 0 : i32
    %c0_i32_1 = arith.constant 0 : i32
    return %arg0, %c0_i32, %c0_i32_0 : i32, i32, i32
  }
  func.func @transform_2(%arg0: i32, %arg1: i32) -> (i32, i32) {
    %c0_i32 = arith.constant 0 : i32
    %c0_i32_0 = arith.constant 0 : i32
    %c0_i32_1 = arith.constant 0 : i32
    return %c0_i32, %c0_i32_0 : i32, i32
  }
  func.func @transform_3(%arg0: i32, %arg1: i32) -> (i32, i32, i32) {
    %c0_i32 = arith.constant 0 : i32
    %c0_i32_0 = arith.constant 0 : i32
    return %arg0, %arg1, %c0_i32 : i32, i32, i32
  }
}

</mosaic_0001>

<llo_original>
// kernel: tpu_custom_call.1
$region0: #{tpu_custom_call.1}
  #allocation0 [shape = 'u32[]', space=smem, size = 0x4, offset = 0x4, fixed_abs, tag = 'smem constant byte address 0x4 - core index']
  #allocation1 [shape = 'u32[144,128]{1,0:T(1,128)}', space=vmem, size = 0x12000, scoped, tag = 'internal scratch']
  %s0 = inlined_call_operand.vmem [shape: bf16[1,8192,32], index: 0, kind: input, shape index: {}]
  %s1 = inlined_call_operand.hbm [shape: bf16[1,32,128], index: 1, kind: input, shape index: {}]
  %s2 = inlined_call_operand.hbm [shape: f32[1,128], index: 2, kind: input, shape index: {}]
  %s3 = inlined_call_operand.hbm [shape: f32[1,8192,128], index: 3, kind: output, shape index: {}]
  %s4 = sld [smem:[#allocation0]]
  $region53: #{tpu_custom_call.1} parent=0
    _
  %s6 = ssub.s32 1, %s4
  %s7 = scalar_select 0, %s6, %s4
  $region1: #{tpu_custom_call.1} parent=0
    #allocation2 [shape = 'u8[8192]{0}', space=vmem, size = 0x2000, scoped, tag = 'input window, operand 1, single buffered']
    #allocation3 [shape = 's32[2]{0}', space=sflag, size = 0x8, scoped, tag = 'scoped memory for tpu_custom_call.1']
    #allocation4 [shape = 's32[2]{0}', space=sflag, size = 0x8, scoped, tag = 'scoped memory for tpu_custom_call.1']
    #allocation5 [shape = 'u8[512]{0}', space=vmem, size = 0x400, scoped, tag = 'input window, operand 2, single buffered']
    #allocation6 [shape = 's32[1]{0}', space=sflag, size = 0x4, scoped, tag = 'scoped memory for tpu_custom_call.1']
    #allocation7 [shape = 'u8[524288]{0}', space=vmem, size = 0x80000, scoped, tag = 'output window, operand 0']
    %8 = vsyncpa [#allocation3], 0
    %9 = vsyncpa [#allocation6], 0
    %10 = vsyncpa [#allocation4], 0
    %s11 = scalar_lea.sflag [#allocation4], 1
    %12 = vsyncpa %s11, 0
    loop: start=0, step=1, limit=18
    $region2: #{tpu_custom_call.1} parent=1 // loop_pre_header
      _
    $region3: #{tpu_custom_call.1} parent=1 // loop_header
      %s14 = sphi 0, %s18
      %p15 = scmp.ge.s32.totalorder %s14, 18
      %s21 = sphi 0, %s33
      %s22 = sphi 0, %s29
      %s23 = sphi 0, %s21
      %s24 = sphi 0, %s22
      %s25 = sphi 0, %s23
      %s26 = sphi 0, %s24
      %s38 = sphi 0, %s40
      %s41 = sphi 0, %s38
      %s42 = sphi 0, %s41
      %s58 = sphi 0, %s42
      %s64 = sphi 0, %s66
      %s67 = sphi 0, %s64
      %s68 = sphi 0, %s67
      %s84 = sphi 0, %s68
      %s88 = sphi 0, %s88
      %s90 = sphi 0, %s88
      %s91 = sphi 0, %s90
      %s105 = sphi 0, %s91
      %s113 = sphi 0, %s115
      %s116 = sphi 0, %s113
      %s117 = sphi 0, %s116
      %s133 = sphi 0, %s117
    $region4: #{tpu_custom_call.1} parent=1 // loop_header_branch
      %17 = sbr.rel (%p15) target = $region8
    $region5: #{tpu_custom_call.1} parent=1 // loop_body
      %s19 = ssub.s32 %s14, 1
      %s20 = ssub.s32 %s14, 2
      %s27 = sadd.s32 1, %s22
      %p28 = scmp.ge.s32.totalorder %s27, 16
      %s29 = scalar_select %p28, 0, %s27
      %s30 = sadd.s32 1, %s21
      %s31 = scalar_select %p28, %s30, %s21
      %p32 = scmp.ge.s32.totalorder %s31, 1
      %s33 = scalar_select %p32, 0, %s31
      %s34 = ssub.s32 %s21, %s33
      %s35 = ssub.s32 %s22, %s29
      %s36 = sor.u32 %s34, %s35
      %p37 = scmp.eq.s32.totalorder %s36, 0
      %s39 = sadd.s32 %s38, 1
      %s40 = scalar_select %p37, %s38, %s39
      %p43 = pneg %p37
      %p44 = scmp.eq.s32.totalorder %s14, 15
      %p45 = por %p43, %p44
      %p46 = scmp.ne.s32.totalorder %s38, %s41
      %p47 = scmp.eq.s32.totalorder %s14, 0
      %p48 = por %p46, %p47
      %p49 = scmp.ne.s32.totalorder %s38, %s41
      %p50 = scmp.eq.s32.totalorder %s19, 15
      %p51 = por %p49, %p50
      %p52 = scmp.ne.s32.totalorder %s41, %s42
      %p53 = scmp.eq.s32.totalorder %s19, 0
      %p54 = por %p52, %p53
      %p55 = scmp.ne.s32.totalorder %s41, %s42
      %p56 = scmp.eq.s32.totalorder %s20, 15
      %p57 = por %p55, %p56
      %p59 = scmp.ne.s32.totalorder %s42, %s58
      %p60 = scmp.eq.s32.totalorder %s20, 0
      %p61 = por %p59, %p60
      %s62 = ssub.s32 %s21, %s33
      %p63 = scmp.eq.s32.totalorder %s62, 0
      %s65 = sadd.s32 %s64, 1
      %s66 = scalar_select %p63, %s64, %s65
      %p69 = pneg %p63
      %p70 = scmp.eq.s32.totalorder %s14, 15
      %p71 = por %p69, %p70
      %p72 = scmp.ne.s32.totalorder %s64, %s67
      %p73 = scmp.eq.s32.totalorder %s14, 0
      %p74 = por %p72, %p73
      %p75 = scmp.ne.s32.totalorder %s64, %s67
      %p76 = scmp.eq.s32.totalorder %s19, 15
      %p77 = por %p75, %p76
      %p78 = scmp.ne.s32.totalorder %s67, %s68
      %p79 = scmp.eq.s32.totalorder %s19, 0
      %p80 = por %p78, %p79
      %p81 = scmp.ne.s32.totalorder %s67, %s68
      %p82 = scmp.eq.s32.totalorder %s20, 15
      %p83 = por %p81, %p82
      %p85 = scmp.ne.s32.totalorder %s68, %s84
      %p86 = scmp.eq.s32.totalorder %s20, 0
      %p87 = por %p85, %p86
      %s89 = sadd.s32 %s88, 1
      %p92 = scmp.eq.s32.totalorder %s14, 15
      %p93 = scmp.ne.s32.totalorder %s88, %s90
      %p94 = scmp.eq.s32.totalorder %s14, 0
      %p95 = por %p93, %p94
      %p96 = scmp.ne.s32.totalorder %s88, %s90
      %p97 = scmp.eq.s32.totalorder %s19, 15
      %p98 = por %p96, %p97
      %p99 = scmp.ne.s32.totalorder %s90, %s91
      %p100 = scmp.eq.s32.totalorder %s19, 0
      %p101 = por %p99, %p100
      %p102 = scmp.ne.s32.totalorder %s90, %s91
      %p103 = scmp.eq.s32.totalorder %s20, 15
      %p104 = por %p102, %p103
      %p106 = scmp.ne.s32.totalorder %s91, %s105
      %p107 = scmp.eq.s32.totalorder %s20, 0
      %p108 = por %p106, %p107
      %s109 = ssub.s32 %s21, %s33
      %s110 = ssub.s32 %s22, %s29
      %s111 = sor.u32 %s109, %s110
      %p112 = scmp.eq.s32.totalorder %s111, 0
      %s114 = sadd.s32 %s113, 1
      %s115 = scalar_select %p112, %s113, %s114
      %p118 = pneg %p112
      %p119 = scmp.eq.s32.totalorder %s14, 15
      %p120 = por %p118, %p119
      %p121 = scmp.ne.s32.totalorder %s113, %s116
      %p122 = scmp.eq.s32.totalorder %s14, 0
      %p123 = por %p121, %p122
      %p124 = scmp.ne.s32.totalorder %s113, %s116
      %p125 = scmp.eq.s32.totalorder %s19, 15
      %p126 = por %p124, %p125
      %p127 = scmp.ne.s32.totalorder %s116, %s117
      %p128 = scmp.eq.s32.totalorder %s19, 0
      %p129 = por %p127, %p128
      %p130 = scmp.ne.s32.totalorder %s116, %s117
      %p131 = scmp.eq.s32.totalorder %s20, 15
      %p132 = por %p130, %p131
      %p134 = scmp.ne.s32.totalorder %s117, %s133
      %p135 = scmp.eq.s32.totalorder %s20, 0
      %p136 = por %p134, %p135
      %p137 = scmp.le.s32.totalorder 1, %s14
      %p138 = scmp.lt.s32.totalorder %s14, 17
      %p139 = pnand %p137, %p138
      %p140 = pneg %p139
      // Predicated region
      $region9: #{tpu_custom_call.1} parent=5 // pred_check
        _
      $region10: #{tpu_custom_call.1} parent=5 // pred_check_branch
        %142 = sbr.rel (%p139) target = $region12
      $region11: #{tpu_custom_call.1} parent=5 // pred_region
        %s143 = ssub.s32 %s14, 1
        // Predicated region
        $region13: #{tpu_custom_call.1} parent=11 // pred_check
          %p144 = pneg %p80
        $region14: #{tpu_custom_call.1} parent=11 // pred_check_branch
          %146 = sbr.rel (%p144) target = $region16
        $region15: #{tpu_custom_call.1} parent=11 // pred_region
          %s148 = ssub.s32 256, 256
          %149 = vsyncadd [#allocation3], %s148
          %s150 = smul.addr %s23, 4
          %s151 = smul.addr %s150, 64
          %s152 = scalar_lea.hbm %s1, %s151
          %s153 = sshll.u32 [#allocation2], 4
          %s154 = int_to_ptr.vmem [resolvable:$true] %s153
          %159 = dma.hbm_to_vmem [thread:$0]  %s152, 256, %s154, [#allocation3], 64, 64, 4
        $region16: #{tpu_custom_call.1} parent=11 // pred_fallthru
          _
        // Predicated region
        $region17: #{tpu_custom_call.1} parent=11 // pred_check
          %p160 = pneg %p101
        $region18: #{tpu_custom_call.1} parent=11 // pred_check_branch
          %162 = sbr.rel (%p160) target = $region20
        $region19: #{tpu_custom_call.1} parent=11 // pred_region
          %s164 = ssub.s32 16, 16
          %165 = vsyncadd [#allocation6], %s164
          %s167 = sshll.u32 [#allocation5], 4
          %s168 = int_to_ptr.vmem [resolvable:$true] %s167
          %170 = dma.hbm_to_vmem [thread:$0]  %s2, 16, %s168, [#allocation6]
        $region20: #{tpu_custom_call.1} parent=11 // pred_fallthru
          _
      $region12: #{tpu_custom_call.1} parent=5 // pred_fallthru
        _
      %p171 = scmp.lt.s32.totalorder %s14, 16
      // Predicated region
      $region21: #{tpu_custom_call.1} parent=5 // pred_check
        %p172 = pneg %p171
      $region22: #{tpu_custom_call.1} parent=5 // pred_check_branch
        %174 = sbr.rel (%p172) target = $region24
      $region23: #{tpu_custom_call.1} parent=5 // pred_region
        // Predicated region
        $region25: #{tpu_custom_call.1} parent=23 // pred_check
          %p175 = pneg %p48
        $region26: #{tpu_custom_call.1} parent=23 // pred_check_branch
          %177 = sbr.rel (%p175) target = $region28
        $region27: #{tpu_custom_call.1} parent=23 // pred_region
          %s178 = smul.u32 64, %s22
          %p179 = scmp.lt.s32.totalorder %s21, 0
          %s180 = scalar_select %p179, %s21, 0
          %p181 = scmp.lt.s32.totalorder %s178, 1023
          %s182 = scalar_select %p181, %s178, 1023
          %s183 = smul.addr %s180, 1024
          %s184 = sadd.s32 %s182, %s183
          %s185 = smul.addr %s184, 4
          %s186 = scalar_lea.vmem %s0, %s185
          %s187 = smul.u32 64, %s22
        $region28: #{tpu_custom_call.1} parent=23 // pred_fallthru
          _
      $region24: #{tpu_custom_call.1} parent=5 // pred_fallthru
        _
      %p188 = scmp.le.s32.totalorder 1, %s14
      %p189 = scmp.lt.s32.totalorder %s14, 17
      %p190 = pnand %p188, %p189
      %p191 = pneg %p190
      // Predicated region
      $region29: #{tpu_custom_call.1} parent=5 // pred_check
        _
      $region30: #{tpu_custom_call.1} parent=5 // pred_check_branch
        %193 = sbr.rel (%p190) target = $region32
      $region31: #{tpu_custom_call.1} parent=5 // pred_region
        %s194 = ssub.s32 %s14, 1
        // Predicated region
        $region33: #{tpu_custom_call.1} parent=31 // pred_check
          %p195 = pneg %p80
        $region34: #{tpu_custom_call.1} parent=31 // pred_check_branch
          %197 = sbr.rel (%p195) target = $region36
        $region35: #{tpu_custom_call.1} parent=31 // pred_region
          %198 = dma.done [#allocation3], 256
        $region36: #{tpu_custom_call.1} parent=31 // pred_fallthru
          _
        // Predicated region
        $region37: #{tpu_custom_call.1} parent=31 // pred_check
          %p199 = pneg %p101
        $region38: #{tpu_custom_call.1} parent=31 // pred_check_branch
          %201 = sbr.rel (%p199) target = $region40
        $region39: #{tpu_custom_call.1} parent=31 // pred_region
          %202 = dma.done [#allocation6], 16
        $region40: #{tpu_custom_call.1} parent=31 // pred_fallthru
          _
        %s203 = smul.u32 64, %s24
        %p204 = scmp.lt.s32.totalorder %s23, 0
        %s205 = scalar_select %p204, %s23, 0
        %p206 = scmp.lt.s32.totalorder %s203, 1023
        %s207 = scalar_select %p206, %s203, 1023
        %s208 = smul.addr %s205, 1024
        %s209 = sadd.s32 %s207, %s208
        %s210 = smul.addr %s209, 4
        %s211 = scalar_lea.vmem %s0, %s210
        %p212 = pneg %p54
        %p213 = pneg %p51
        %p214 = pneg %p80
        %p215 = pneg %p77
        %p216 = pneg %p101
        %p217 = pneg %p98
        %p218 = pneg %p129
        %p219 = pneg %p126
        %s220 = sand.u32 %s116, 1
        %s221 = scalar_lea.sflag [#allocation4], %s220
        %s222 = sand.u32 %s116, 1
        %s223 = smul.addr %s222, 512
        %s224 = scalar_lea.vmem [#allocation7], %s223
        %s225 = smul.u32 64, %s24
        %p226 = scmp.lt.s32.totalorder %s23, 0
        %s227 = scalar_select %p226, %s23, 0
        %p228 = scmp.lt.s32.totalorder %s225, 1023
        %s229 = scalar_select %p228, %s225, 1023
        %s230 = smul.addr %s227, 1024
        %s231 = sadd.s32 %s229, %s230
        %s232 = smul.addr %s231, 4
        %s233 = scalar_lea.vmem %s0, %s232
        %s234 = smul.u32 64, %s24
        %s235 = smul.u32 64, %s24
        %v237 = vld [vmem:[%s233] sm:$0xf]
        %v238 = vld [vmem:[%s233 + $0x4] sm:$0xf]
        %v239 = vld [vmem:[%s233 + $0x8] sm:$0xf]
        %v240 = vld [vmem:[%s233 + $0xc] sm:$0xf]
        %v241 = vld [vmem:[%s233 + $0x10] sm:$0xf]
        %v242 = vld [vmem:[%s233 + $0x14] sm:$0xf]
        %v243 = vld [vmem:[%s233 + $0x18] sm:$0xf]
        %v244 = vld [vmem:[%s233 + $0x1c] sm:$0xf]
        %v245 = vld [vmem:[%s233 + $0x20] sm:$0xf]
        %v246 = vld [vmem:[%s233 + $0x24] sm:$0xf]
        %v247 = vld [vmem:[%s233 + $0x28] sm:$0xf]
        %v248 = vld [vmem:[%s233 + $0x2c] sm:$0xf]
        %v249 = vld [vmem:[%s233 + $0x30] sm:$0xf]
        %v250 = vld [vmem:[%s233 + $0x34] sm:$0xf]
        %v251 = vld [vmem:[%s233 + $0x38] sm:$0xf]
        %v252 = vld [vmem:[%s233 + $0x3c] sm:$0xf]
        %v253 = vld [vmem:[%s233 + $0x40] sm:$0xf]
        %v254 = vld [vmem:[%s233 + $0x44] sm:$0xf]
        %v255 = vld [vmem:[%s233 + $0x48] sm:$0xf]
        %v256 = vld [vmem:[%s233 + $0x4c] sm:$0xf]
        %v257 = vld [vmem:[%s233 + $0x50] sm:$0xf]
        %v258 = vld [vmem:[%s233 + $0x54] sm:$0xf]
        %v259 = vld [vmem:[%s233 + $0x58] sm:$0xf]
        %v260 = vld [vmem:[%s233 + $0x5c] sm:$0xf]
        %v261 = vld [vmem:[%s233 + $0x60] sm:$0xf]
        %v262 = vld [vmem:[%s233 + $0x64] sm:$0xf]
        %v263 = vld [vmem:[%s233 + $0x68] sm:$0xf]
        %v264 = vld [vmem:[%s233 + $0x6c] sm:$0xf]
        %v265 = vld [vmem:[%s233 + $0x70] sm:$0xf]
        %v266 = vld [vmem:[%s233 + $0x74] sm:$0xf]
        %v267 = vld [vmem:[%s233 + $0x78] sm:$0xf]
        %v268 = vld [vmem:[%s233 + $0x7c] sm:$0xf]
        %v269 = vld [vmem:[%s233 + $0x80] sm:$0xf]
        %v270 = vld [vmem:[%s233 + $0x84] sm:$0xf]
        %v271 = vld [vmem:[%s233 + $0x88] sm:$0xf]
        %v272 = vld [vmem:[%s233 + $0x8c] sm:$0xf]
        %v273 = vld [vmem:[%s233 + $0x90] sm:$0xf]
        %v274 = vld [vmem:[%s233 + $0x94] sm:$0xf]
        %v275 = vld [vmem:[%s233 + $0x98] sm:$0xf]
        %v276 = vld [vmem:[%s233 + $0x9c] sm:$0xf]
        %v277 = vld [vmem:[%s233 + $0xa0] sm:$0xf]
        %v278 = vld [vmem:[%s233 + $0xa4] sm:$0xf]
        %v279 = vld [vmem:[%s233 + $0xa8] sm:$0xf]
        %v280 = vld [vmem:[%s233 + $0xac] sm:$0xf]
        %v281 = vld [vmem:[%s233 + $0xb0] sm:$0xf]
        %v282 = vld [vmem:[%s233 + $0xb4] sm:$0xf]
        %v283 = vld [vmem:[%s233 + $0xb8] sm:$0xf]
        %v284 = vld [vmem:[%s233 + $0xbc] sm:$0xf]
        %v285 = vld [vmem:[%s233 + $0xc0] sm:$0xf]
        %v286 = vld [vmem:[%s233 + $0xc4] sm:$0xf]
        %v287 = vld [vmem:[%s233 + $0xc8] sm:$0xf]
        %v288 = vld [vmem:[%s233 + $0xcc] sm:$0xf]
        %v289 = vld [vmem:[%s233 + $0xd0] sm:$0xf]
        %v290 = vld [vmem:[%s233 + $0xd4] sm:$0xf]
        %v291 = vld [vmem:[%s233 + $0xd8] sm:$0xf]
        %v292 = vld [vmem:[%s233 + $0xdc] sm:$0xf]
        %v293 = vld [vmem:[%s233 + $0xe0] sm:$0xf]
        %v294 = vld [vmem:[%s233 + $0xe4] sm:$0xf]
        %v295 = vld [vmem:[%s233 + $0xe8] sm:$0xf]
        %v296 = vld [vmem:[%s233 + $0xec] sm:$0xf]
        %v297 = vld [vmem:[%s233 + $0xf0] sm:$0xf]
        %v298 = vld [vmem:[%s233 + $0xf4] sm:$0xf]
        %v299 = vld [vmem:[%s233 + $0xf8] sm:$0xf]
        %v300 = vld [vmem:[%s233 + $0xfc] sm:$0xf]
        %v301 = vld [vmem:[#allocation2] sm:$0xf]
        %v302 = vld [vmem:[#allocation2 + $0x4] sm:$0xf]
        %v303 = vld [vmem:[#allocation2 + $0x8] sm:$0xf]
        %v304 = vld [vmem:[#allocation2 + $0xc] sm:$0xf]
        %v305 = vld [vmem:[#allocation5] sm:$0x1]
        %v307 = vlaneseq
        %v308 = vshrl.u32 %v307, 7
        %v309 = vsub.s32 0, %v308
        %v310 = vrot.slane %v305, %v309
        %v376 = vunpack.c.l.b16 %v237
        %v377 = vunpack.c.l.b16 %v238
        %v378 = vunpack.c.l.b16 %v239
        %v379 = vunpack.c.l.b16 %v240
        %v380 = vunpack.c.l.b16 %v241
        %v381 = vunpack.c.l.b16 %v242
        %v382 = vunpack.c.l.b16 %v243
        %v383 = vunpack.c.l.b16 %v244
        %v384 = vunpack.c.l.b16 %v245
        %v385 = vunpack.c.l.b16 %v246
        %v386 = vunpack.c.l.b16 %v247
        %v387 = vunpack.c.l.b16 %v248
        %v388 = vunpack.c.l.b16 %v249
        %v389 = vunpack.c.l.b16 %v250
        %v390 = vunpack.c.l.b16 %v251
        %v391 = vunpack.c.l.b16 %v252
        %v392 = vunpack.c.l.b16 %v253
        %v393 = vunpack.c.l.b16 %v254
        %v394 = vunpack.c.l.b16 %v255
        %v395 = vunpack.c.l.b16 %v256
        %v396 = vunpack.c.l.b16 %v257
        %v397 = vunpack.c.l.b16 %v258
        %v398 = vunpack.c.l.b16 %v259
        %v399 = vunpack.c.l.b16 %v260
        %v400 = vunpack.c.l.b16 %v261
        %v401 = vunpack.c.l.b16 %v262
        %v402 = vunpack.c.l.b16 %v263
        %v403 = vunpack.c.l.b16 %v264
        %v404 = vunpack.c.l.b16 %v265
        %v405 = vunpack.c.l.b16 %v266
        %v406 = vunpack.c.l.b16 %v267
        %v407 = vunpack.c.l.b16 %v268
        %v408 = vunpack.c.l.b16 %v269
        %v409 = vunpack.c.l.b16 %v270
        %v410 = vunpack.c.l.b16 %v271
        %v411 = vunpack.c.l.b16 %v272
        %v412 = vunpack.c.l.b16 %v273
        %v413 = vunpack.c.l.b16 %v274
        %v414 = vunpack.c.l.b16 %v275
        %v415 = vunpack.c.l.b16 %v276
        %v416 = vunpack.c.l.b16 %v277
        %v417 = vunpack.c.l.b16 %v278
        %v418 = vunpack.c.l.b16 %v279
        %v419 = vunpack.c.l.b16 %v280
        %v420 = vunpack.c.l.b16 %v281
        %v421 = vunpack.c.l.b16 %v282
        %v422 = vunpack.c.l.b16 %v283
        %v423 = vunpack.c.l.b16 %v284
        %v424 = vunpack.c.l.b16 %v285
        %v425 = vunpack.c.l.b16 %v286
        %v426 = vunpack.c.l.b16 %v287
        %v427 = vunpack.c.l.b16 %v288
        %v428 = vunpack.c.l.b16 %v289
        %v429 = vunpack.c.l.b16 %v290
        %v430 = vunpack.c.l.b16 %v291
        %v431 = vunpack.c.l.b16 %v292
        %v432 = vunpack.c.l.b16 %v293
        %v433 = vunpack.c.l.b16 %v294
        %v434 = vunpack.c.l.b16 %v295
        %v435 = vunpack.c.l.b16 %v296
        %v436 = vunpack.c.l.b16 %v297
        %v437 = vunpack.c.l.b16 %v298
        %v438 = vunpack.c.l.b16 %v299
        %v439 = vunpack.c.l.b16 %v300
        %v440 = vpack.c.b16 %v377, %v376
        %v441 = vpack.c.b16 %v379, %v378
        %v442 = vpack.c.b16 %v381, %v380
        %v443 = vpack.c.b16 %v383, %v382
        %v444 = vpack.c.b16 %v385, %v384
        %v445 = vpack.c.b16 %v387, %v386
        %v446 = vpack.c.b16 %v389, %v388
        %v447 = vpack.c.b16 %v391, %v390
        %v448 = vpack.c.b16 %v393, %v392
        %v449 = vpack.c.b16 %v395, %v394
        %v450 = vpack.c.b16 %v397, %v396
        %v451 = vpack.c.b16 %v399, %v398
        %v452 = vpack.c.b16 %v401, %v400
        %v453 = vpack.c.b16 %v403, %v402
        %v454 = vpack.c.b16 %v405, %v404
        %v455 = vpack.c.b16 %v407, %v406
        %v456 = vpack.c.b16 %v409, %v408
        %v457 = vpack.c.b16 %v411, %v410
        %v458 = vpack.c.b16 %v413, %v412
        %v459 = vpack.c.b16 %v415, %v414
        %v460 = vpack.c.b16 %v417, %v416
        %v461 = vpack.c.b16 %v419, %v418
        %v462 = vpack.c.b16 %v421, %v420
        %v463 = vpack.c.b16 %v423, %v422
        %v464 = vpack.c.b16 %v425, %v424
        %v465 = vpack.c.b16 %v427, %v426
        %v466 = vpack.c.b16 %v429, %v428
        %v467 = vpack.c.b16 %v431, %v430
        %v468 = vpack.c.b16 %v433, %v432
        %v469 = vpack.c.b16 %v435, %v434
        %v470 = vpack.c.b16 %v437, %v436
        %v471 = vpack.c.b16 %v439, %v438
        %v476 = vunpack.c.l.b16 %v301
        %v477 = vunpack.c.l.b16 %v302
        %v478 = vunpack.c.l.b16 %v303
        %v479 = vunpack.c.l.b16 %v304
        %v480 = vpack.c.b16 %v477, %v476
        %v481 = vpack.c.b16 %v479, %v478
        %vm484 = vcmask 261120
        %v486 = vsel %vm484, %v440, 0
        %v489 = vsel %vm484, %v441, 0
        %v492 = vsel %vm484, %v442, 0
        %v495 = vsel %vm484, %v443, 0
        %v498 = vsel %vm484, %v444, 0
        %v501 = vsel %vm484, %v445, 0
        %v504 = vsel %vm484, %v446, 0
        %v507 = vsel %vm484, %v447, 0
        %v510 = vsel %vm484, %v448, 0
        %v513 = vsel %vm484, %v449, 0
        %v516 = vsel %vm484, %v450, 0
        %v519 = vsel %vm484, %v451, 0
        %v522 = vsel %vm484, %v452, 0
        %v525 = vsel %vm484, %v453, 0
        %v528 = vsel %vm484, %v454, 0
        %v531 = vsel %vm484, %v455, 0
        %v534 = vsel %vm484, %v456, 0
        %v537 = vsel %vm484, %v457, 0
        %v540 = vsel %vm484, %v458, 0
        %v543 = vsel %vm484, %v459, 0
        %v546 = vsel %vm484, %v460, 0
        %v549 = vsel %vm484, %v461, 0
        %v552 = vsel %vm484, %v462, 0
        %v555 = vsel %vm484, %v463, 0
        %v558 = vsel %vm484, %v464, 0
        %v561 = vsel %vm484, %v465, 0
        %v564 = vsel %vm484, %v466, 0
        %v567 = vsel %vm484, %v467, 0
        %v570 = vsel %vm484, %v468, 0
        %v573 = vsel %vm484, %v469, 0
        %v576 = vsel %vm484, %v470, 0
        %v579 = vsel %vm484, %v471, 0
        %581 = vmatprep.subr.bf16.mxu0 0
        %582 = vmatpush1.bf16.msra.mxu0 %v480
        %583 = vmatprep.subr.bf16.mxu0 0
        %584 = vmatpush1.bf16.msra.mxu0 %v481
        %585 = vmatprep.subr.bf16.mxu0 0
        %586 = vmatpush1.bf16.msra.mxu0 0
        %587 = vmatprep.subr.bf16.mxu0 0
        %588 = vmatpush1.bf16.msra.mxu0 0
        %589 = vmatprep.subr.bf16.mxu0 0
        %590 = vmatpush1.bf16.msra.mxu0 0
        %591 = vmatprep.subr.bf16.mxu0 0
        %592 = vmatpush1.bf16.msra.mxu0 0
        %593 = vmatprep.subr.bf16.mxu0 0
        %594 = vmatpush1.bf16.msra.mxu0 0
        %595 = vmatprep.subr.bf16.mxu0 0
        %596 = vmatpush1.bf16.msra.mxu0 0
        %597 = vmatprep.subr.bf16.mxu0 0
        %598 = vmatpush1.bf16.msra.mxu0 0
        %599 = vmatprep.subr.bf16.mxu0 0
        %600 = vmatpush1.bf16.msra.mxu0 0
        %601 = vmatprep.subr.bf16.mxu0 0
        %602 = vmatpush1.bf16.msra.mxu0 0
        %603 = vmatprep.subr.bf16.mxu0 0
        %604 = vmatpush1.bf16.msra.mxu0 0
        %605 = vmatprep.subr.bf16.mxu0 0
        %606 = vmatpush1.bf16.msra.mxu0 0
        %607 = vmatprep.subr.bf16.mxu0 0
        %608 = vmatpush1.bf16.msra.mxu0 0
        %609 = vmatprep.subr.bf16.mxu0 0
        %610 = vmatpush1.bf16.msra.mxu0 0
        %611 = vmatprep.subr.bf16.mxu0 0
        %612 = vmatpush1.bf16.msra.mxu0 0
        %613 = vmatprep.mubr.bf16.mxu0 0
        %614 = vmatmul.mubr.bf16.gmra.mrb[0].mxu0 %v486
        %v615 = vpop.f32.mrb[0].mxu0
        %v616 = vadd.f32 %v310, %v615
        %v617 = vpop.f32.mrb[0].mxu0
        %v618 = vpop.f32.mrb[0].mxu0
        %v619 = vadd.f32 %v310, %v618
        %v620 = vpop.f32.mrb[0].mxu0
        %621 = vmatprep.mubr.bf16.mxu0 0
        %622 = vmatmul.mubr.bf16.gmra.mrb[0].mxu0 %v489
        %v623 = vpop.f32.mrb[0].mxu0
        %v624 = vadd.f32 %v310, %v623
        %v625 = vpop.f32.mrb[0].mxu0
        %v626 = vpop.f32.mrb[0].mxu0
        %v627 = vadd.f32 %v310, %v626
        %v628 = vpop.f32.mrb[0].mxu0
        %629 = vmatprep.mubr.bf16.mxu0 0
        %630 = vmatmul.mubr.bf16.gmra.mrb[0].mxu0 %v492
        %v631 = vpop.f32.mrb[0].mxu0
        %v632 = vadd.f32 %v310, %v631
        %v633 = vpop.f32.mrb[0].mxu0
        %v634 = vpop.f32.mrb[0].mxu0
        %v635 = vadd.f32 %v310, %v634
        %v636 = vpop.f32.mrb[0].mxu0
        %637 = vmatprep.mubr.bf16.mxu0 0
        %638 = vmatmul.mubr.bf16.gmra.mrb[0].mxu0 %v495
        %v639 = vpop.f32.mrb[0].mxu0
        %v640 = vadd.f32 %v310, %v639
        %v641 = vpop.f32.mrb[0].mxu0
        %v642 = vpop.f32.mrb[0].mxu0
        %v643 = vadd.f32 %v310, %v642
        %v644 = vpop.f32.mrb[0].mxu0
        %645 = vmatprep.mubr.bf16.mxu0 0
        %646 = vmatmul.mubr.bf16.gmra.mrb[0].mxu0 %v498
        %v647 = vpop.f32.mrb[0].mxu0
        %v648 = vadd.f32 %v310, %v647
        %v649 = vpop.f32.mrb[0].mxu0
        %v650 = vpop.f32.mrb[0].mxu0
        %v651 = vadd.f32 %v310, %v650
        %v652 = vpop.f32.mrb[0].mxu0
        %653 = vmatprep.mubr.bf16.mxu0 0
        %654 = vmatmul.mubr.bf16.gmra.mrb[0].mxu0 %v501
        %v655 = vpop.f32.mrb[0].mxu0
        %v656 = vadd.f32 %v310, %v655
        %v657 = vpop.f32.mrb[0].mxu0
        %v658 = vpop.f32.mrb[0].mxu0
        %v659 = vadd.f32 %v310, %v658
        %v660 = vpop.f32.mrb[0].mxu0
        %661 = vmatprep.mubr.bf16.mxu0 0
        %662 = vmatmul.mubr.bf16.gmra.mrb[0].mxu0 %v504
        %v663 = vpop.f32.mrb[0].mxu0
        %v664 = vadd.f32 %v310, %v663
        %v665 = vpop.f32.mrb[0].mxu0
        %v666 = vpop.f32.mrb[0].mxu0
        %v667 = vadd.f32 %v310, %v666
        %v668 = vpop.f32.mrb[0].mxu0
        %669 = vmatprep.mubr.bf16.mxu0 0
        %670 = vmatmul.mubr.bf16.gmra.mrb[0].mxu0 %v507
        %v671 = vpop.f32.mrb[0].mxu0
        %v672 = vadd.f32 %v310, %v671
        %v673 = vpop.f32.mrb[0].mxu0
        %v674 = vpop.f32.mrb[0].mxu0
        %v675 = vadd.f32 %v310, %v674
        %v676 = vpop.f32.mrb[0].mxu0
        %677 = vmatprep.mubr.bf16.mxu0 0
        %678 = vmatmul.mubr.bf16.gmra.mrb[0].mxu0 %v510
        %v679 = vpop.f32.mrb[0].mxu0
        %v680 = vadd.f32 %v310, %v679
        %v681 = vpop.f32.mrb[0].mxu0
        %v682 = vpop.f32.mrb[0].mxu0
        %v683 = vadd.f32 %v310, %v682
        %v684 = vpop.f32.mrb[0].mxu0
        %685 = vmatprep.mubr.bf16.mxu0 0
        %686 = vmatmul.mubr.bf16.gmra.mrb[0].mxu0 %v513
        %v687 = vpop.f32.mrb[0].mxu0
        %v688 = vadd.f32 %v310, %v687
        %v689 = vpop.f32.mrb[0].mxu0
        %v690 = vpop.f32.mrb[0].mxu0
        %v691 = vadd.f32 %v310, %v690
        %v692 = vpop.f32.mrb[0].mxu0
        %693 = vmatprep.mubr.bf16.mxu0 0
        %694 = vmatmul.mubr.bf16.gmra.mrb[0].mxu0 %v516
        %v695 = vpop.f32.mrb[0].mxu0
        %v696 = vadd.f32 %v310, %v695
        %v697 = vpop.f32.mrb[0].mxu0
        %v698 = vpop.f32.mrb[0].mxu0
        %v699 = vadd.f32 %v310, %v698
        %v700 = vpop.f32.mrb[0].mxu0
        %701 = vmatprep.mubr.bf16.mxu0 0
        %702 = vmatmul.mubr.bf16.gmra.mrb[0].mxu0 %v519
        %v703 = vpop.f32.mrb[0].mxu0
        %v704 = vadd.f32 %v310, %v703
        %v705 = vpop.f32.mrb[0].mxu0
        %v706 = vpop.f32.mrb[0].mxu0
        %v707 = vadd.f32 %v310, %v706
        %v708 = vpop.f32.mrb[0].mxu0
        %709 = vmatprep.mubr.bf16.mxu0 0
        %710 = vmatmul.mubr.bf16.gmra.mrb[0].mxu0 %v522
        %v711 = vpop.f32.mrb[0].mxu0
        %v712 = vadd.f32 %v310, %v711
        %v713 = vpop.f32.mrb[0].mxu0
        %v714 = vpop.f32.mrb[0].mxu0
        %v715 = vadd.f32 %v310, %v714
        %v716 = vpop.f32.mrb[0].mxu0
        %717 = vmatprep.mubr.bf16.mxu0 0
        %718 = vmatmul.mubr.bf16.gmra.mrb[0].mxu0 %v525
        %v719 = vpop.f32.mrb[0].mxu0
        %v720 = vadd.f32 %v310, %v719
        %v721 = vpop.f32.mrb[0].mxu0
        %v722 = vpop.f32.mrb[0].mxu0
        %v723 = vadd.f32 %v310, %v722
        %v724 = vpop.f32.mrb[0].mxu0
        %725 = vmatprep.mubr.bf16.mxu0 0
        %726 = vmatmul.mubr.bf16.gmra.mrb[0].mxu0 %v528
        %v727 = vpop.f32.mrb[0].mxu0
        %v728 = vadd.f32 %v310, %v727
        %v729 = vpop.f32.mrb[0].mxu0
        %v730 = vpop.f32.mrb[0].mxu0
        %v731 = vadd.f32 %v310, %v730
        %v732 = vpop.f32.mrb[0].mxu0
        %733 = vmatprep.mubr.bf16.mxu0 0
        %734 = vmatmul.mubr.bf16.gmra.mrb[0].mxu0 %v531
        %v735 = vpop.f32.mrb[0].mxu0
        %v736 = vadd.f32 %v310, %v735
        %v737 = vpop.f32.mrb[0].mxu0
        %v738 = vpop.f32.mrb[0].mxu0
        %v739 = vadd.f32 %v310, %v738
        %v740 = vpop.f32.mrb[0].mxu0
        %741 = vmatprep.mubr.bf16.mxu0 0
        %742 = vmatmul.mubr.bf16.gmra.mrb[0].mxu0 %v534
        %v743 = vpop.f32.mrb[0].mxu0
        %v744 = vadd.f32 %v310, %v743
        %v745 = vpop.f32.mrb[0].mxu0
        %v746 = vpop.f32.mrb[0].mxu0
        %v747 = vadd.f32 %v310, %v746
        %v748 = vpop.f32.mrb[0].mxu0
        %749 = vmatprep.mubr.bf16.mxu0 0
        %750 = vmatmul.mubr.bf16.gmra.mrb[0].mxu0 %v537
        %v751 = vpop.f32.mrb[0].mxu0
        %v752 = vadd.f32 %v310, %v751
        %v753 = vpop.f32.mrb[0].mxu0
        %v754 = vpop.f32.mrb[0].mxu0
        %v755 = vadd.f32 %v310, %v754
        %v756 = vpop.f32.mrb[0].mxu0
        %757 = vmatprep.mubr.bf16.mxu0 0
        %758 = vmatmul.mubr.bf16.gmra.mrb[0].mxu0 %v540
        %v759 = vpop.f32.mrb[0].mxu0
        %v760 = vadd.f32 %v310, %v759
        %v761 = vpop.f32.mrb[0].mxu0
        %v762 = vpop.f32.mrb[0].mxu0
        %v763 = vadd.f32 %v310, %v762
        %v764 = vpop.f32.mrb[0].mxu0
        %765 = vmatprep.mubr.bf16.mxu0 0
        %766 = vmatmul.mubr.bf16.gmra.mrb[0].mxu0 %v543
        %v767 = vpop.f32.mrb[0].mxu0
        %v768 = vadd.f32 %v310, %v767
        %v769 = vpop.f32.mrb[0].mxu0
        %v770 = vpop.f32.mrb[0].mxu0
        %v771 = vadd.f32 %v310, %v770
        %v772 = vpop.f32.mrb[0].mxu0
        %773 = vmatprep.mubr.bf16.mxu0 0
        %774 = vmatmul.mubr.bf16.gmra.mrb[0].mxu0 %v546
        %v775 = vpop.f32.mrb[0].mxu0
        %v776 = vadd.f32 %v310, %v775
        %v777 = vpop.f32.mrb[0].mxu0
        %v778 = vpop.f32.mrb[0].mxu0
        %v779 = vadd.f32 %v310, %v778
        %v780 = vpop.f32.mrb[0].mxu0
        %781 = vmatprep.mubr.bf16.mxu0 0
        %782 = vmatmul.mubr.bf16.gmra.mrb[0].mxu0 %v549
        %v783 = vpop.f32.mrb[0].mxu0
        %v784 = vadd.f32 %v310, %v783
        %v785 = vpop.f32.mrb[0].mxu0
        %v786 = vpop.f32.mrb[0].mxu0
        %v787 = vadd.f32 %v310, %v786
        %v788 = vpop.f32.mrb[0].mxu0
        %789 = vmatprep.mubr.bf16.mxu0 0
        %790 = vmatmul.mubr.bf16.gmra.mrb[0].mxu0 %v552
        %v791 = vpop.f32.mrb[0].mxu0
        %v792 = vadd.f32 %v310, %v791
        %v793 = vpop.f32.mrb[0].mxu0
        %v794 = vpop.f32.mrb[0].mxu0
        %v795 = vadd.f32 %v310, %v794
        %v796 = vpop.f32.mrb[0].mxu0
        %797 = vmatprep.mubr.bf16.mxu0 0
        %798 = vmatmul.mubr.bf16.gmra.mrb[0].mxu0 %v555
        %v799 = vpop.f32.mrb[0].mxu0
        %v800 = vadd.f32 %v310, %v799
        %v801 = vpop.f32.mrb[0].mxu0
        %v802 = vpop.f32.mrb[0].mxu0
        %v803 = vadd.f32 %v310, %v802
        %v804 = vpop.f32.mrb[0].mxu0
        %805 = vmatprep.mubr.bf16.mxu0 0
        %806 = vmatmul.mubr.bf16.gmra.mrb[0].mxu0 %v558
        %v807 = vpop.f32.mrb[0].mxu0
        %v808 = vadd.f32 %v310, %v807
        %v809 = vpop.f32.mrb[0].mxu0
        %v810 = vpop.f32.mrb[0].mxu0
        %v811 = vadd.f32 %v310, %v810
        %v812 = vpop.f32.mrb[0].mxu0
        %813 = vmatprep.mubr.bf16.mxu0 0
        %814 = vmatmul.mubr.bf16.gmra.mrb[0].mxu0 %v561
        %v815 = vpop.f32.mrb[0].mxu0
        %v816 = vadd.f32 %v310, %v815
        %v817 = vpop.f32.mrb[0].mxu0
        %v818 = vpop.f32.mrb[0].mxu0
        %v819 = vadd.f32 %v310, %v818
        %v820 = vpop.f32.mrb[0].mxu0
        %821 = vmatprep.mubr.bf16.mxu0 0
        %822 = vmatmul.mubr.bf16.gmra.mrb[0].mxu0 %v564
        %v823 = vpop.f32.mrb[0].mxu0
        %v824 = vadd.f32 %v310, %v823
        %v825 = vpop.f32.mrb[0].mxu0
        %v826 = vpop.f32.mrb[0].mxu0
        %v827 = vadd.f32 %v310, %v826
        %v828 = vpop.f32.mrb[0].mxu0
        %829 = vmatprep.mubr.bf16.mxu0 0
        %830 = vmatmul.mubr.bf16.gmra.mrb[0].mxu0 %v567
        %v831 = vpop.f32.mrb[0].mxu0
        %v832 = vadd.f32 %v310, %v831
        %v833 = vpop.f32.mrb[0].mxu0
        %v834 = vpop.f32.mrb[0].mxu0
        %v835 = vadd.f32 %v310, %v834
        %v836 = vpop.f32.mrb[0].mxu0
        %837 = vmatprep.mubr.bf16.mxu0 0
        %838 = vmatmul.mubr.bf16.gmra.mrb[0].mxu0 %v570
        %v839 = vpop.f32.mrb[0].mxu0
        %v840 = vadd.f32 %v310, %v839
        %v841 = vpop.f32.mrb[0].mxu0
        %v842 = vpop.f32.mrb[0].mxu0
        %v843 = vadd.f32 %v310, %v842
        %v844 = vpop.f32.mrb[0].mxu0
        %845 = vmatprep.mubr.bf16.mxu0 0
        %846 = vmatmul.mubr.bf16.gmra.mrb[0].mxu0 %v573
        %v847 = vpop.f32.mrb[0].mxu0
        %v848 = vadd.f32 %v310, %v847
        %v849 = vpop.f32.mrb[0].mxu0
        %v850 = vpop.f32.mrb[0].mxu0
        %v851 = vadd.f32 %v310, %v850
        %v852 = vpop.f32.mrb[0].mxu0
        %853 = vmatprep.mubr.bf16.mxu0 0
        %854 = vmatmul.mubr.bf16.gmra.mrb[0].mxu0 %v576
        %v855 = vpop.f32.mrb[0].mxu0
        %v856 = vadd.f32 %v310, %v855
        %v857 = vpop.f32.mrb[0].mxu0
        %v858 = vpop.f32.mrb[0].mxu0
        %v859 = vadd.f32 %v310, %v858
        %v860 = vpop.f32.mrb[0].mxu0
        %861 = vmatprep.mubr.bf16.mxu0 0
        %862 = vmatmul.mubr.bf16.gmra.mrb[0].mxu0 %v579
        %v863 = vpop.f32.mrb[0].mxu0
        %v864 = vadd.f32 %v310, %v863
        %v865 = vpop.f32.mrb[0].mxu0
        %v866 = vpop.f32.mrb[0].mxu0
        %v867 = vadd.f32 %v310, %v866
        %v868 = vpop.f32.mrb[0].mxu0
        %869 = vdwg.mxu0
        %870 = vst [vmem:[%s224] sm:$0xff] %v616
        %871 = vst [vmem:[%s224 + $0x8] sm:$0xff] %v619
        %872 = vst [vmem:[%s224 + $0x10] sm:$0xff] %v624
        %873 = vst [vmem:[%s224 + $0x18] sm:$0xff] %v627
        %874 = vst [vmem:[%s224 + $0x20] sm:$0xff] %v632
        %875 = vst [vmem:[%s224 + $0x28] sm:$0xff] %v635
        %876 = vst [vmem:[%s224 + $0x30] sm:$0xff] %v640
        %877 = vst [vmem:[%s224 + $0x38] sm:$0xff] %v643
        %878 = vst [vmem:[%s224 + $0x40] sm:$0xff] %v648
        %879 = vst [vmem:[%s224 + $0x48] sm:$0xff] %v651
        %880 = vst [vmem:[%s224 + $0x50] sm:$0xff] %v656
        %881 = vst [vmem:[%s224 + $0x58] sm:$0xff] %v659
        %882 = vst [vmem:[%s224 + $0x60] sm:$0xff] %v664
        %883 = vst [vmem:[%s224 + $0x68] sm:$0xff] %v667
        %884 = vst [vmem:[%s224 + $0x70] sm:$0xff] %v672
        %885 = vst [vmem:[%s224 + $0x78] sm:$0xff] %v675
        %886 = vst [vmem:[%s224 + $0x80] sm:$0xff] %v680
        %887 = vst [vmem:[%s224 + $0x88] sm:$0xff] %v683
        %888 = vst [vmem:[%s224 + $0x90] sm:$0xff] %v688
        %889 = vst [vmem:[%s224 + $0x98] sm:$0xff] %v691
        %890 = vst [vmem:[%s224 + $0xa0] sm:$0xff] %v696
        %891 = vst [vmem:[%s224 + $0xa8] sm:$0xff] %v699
        %892 = vst [vmem:[%s224 + $0xb0] sm:$0xff] %v704
        %893 = vst [vmem:[%s224 + $0xb8] sm:$0xff] %v707
        %894 = vst [vmem:[%s224 + $0xc0] sm:$0xff] %v712
        %895 = vst [vmem:[%s224 + $0xc8] sm:$0xff] %v715
        %896 = vst [vmem:[%s224 + $0xd0] sm:$0xff] %v720
        %897 = vst [vmem:[%s224 + $0xd8] sm:$0xff] %v723
        %898 = vst [vmem:[%s224 + $0xe0] sm:$0xff] %v728
        %899 = vst [vmem:[%s224 + $0xe8] sm:$0xff] %v731
        %900 = vst [vmem:[%s224 + $0xf0] sm:$0xff] %v736
        %901 = vst [vmem:[%s224 + $0xf8] sm:$0xff] %v739
        %902 = vst [vmem:[%s224 + $0x100] sm:$0xff] %v744
        %903 = vst [vmem:[%s224 + $0x108] sm:$0xff] %v747
        %904 = vst [vmem:[%s224 + $0x110] sm:$0xff] %v752
        %905 = vst [vmem:[%s224 + $0x118] sm:$0xff] %v755
        %906 = vst [vmem:[%s224 + $0x120] sm:$0xff] %v760
        %907 = vst [vmem:[%s224 + $0x128] sm:$0xff] %v763
        %908 = vst [vmem:[%s224 + $0x130] sm:$0xff] %v768
        %909 = vst [vmem:[%s224 + $0x138] sm:$0xff] %v771
        %910 = vst [vmem:[%s224 + $0x140] sm:$0xff] %v776
        %911 = vst [vmem:[%s224 + $0x148] sm:$0xff] %v779
        %912 = vst [vmem:[%s224 + $0x150] sm:$0xff] %v784
        %913 = vst [vmem:[%s224 + $0x158] sm:$0xff] %v787
        %914 = vst [vmem:[%s224 + $0x160] sm:$0xff] %v792
        %915 = vst [vmem:[%s224 + $0x168] sm:$0xff] %v795
        %916 = vst [vmem:[%s224 + $0x170] sm:$0xff] %v800
        %917 = vst [vmem:[%s224 + $0x178] sm:$0xff] %v803
        %918 = vst [vmem:[%s224 + $0x180] sm:$0xff] %v808
        %919 = vst [vmem:[%s224 + $0x188] sm:$0xff] %v811
        %920 = vst [vmem:[%s224 + $0x190] sm:$0xff] %v816
        %921 = vst [vmem:[%s224 + $0x198] sm:$0xff] %v819
        %922 = vst [vmem:[%s224 + $0x1a0] sm:$0xff] %v824
        %923 = vst [vmem:[%s224 + $0x1a8] sm:$0xff] %v827
        %924 = vst [vmem:[%s224 + $0x1b0] sm:$0xff] %v832
        %925 = vst [vmem:[%s224 + $0x1b8] sm:$0xff] %v835
        %926 = vst [vmem:[%s224 + $0x1c0] sm:$0xff] %v840
        %927 = vst [vmem:[%s224 + $0x1c8] sm:$0xff] %v843
        %928 = vst [vmem:[%s224 + $0x1d0] sm:$0xff] %v848
        %929 = vst [vmem:[%s224 + $0x1d8] sm:$0xff] %v851
        %930 = vst [vmem:[%s224 + $0x1e0] sm:$0xff] %v856
        %931 = vst [vmem:[%s224 + $0x1e8] sm:$0xff] %v859
        %932 = vst [vmem:[%s224 + $0x1f0] sm:$0xff] %v864
        %933 = vst [vmem:[%s224 + $0x1f8] sm:$0xff] %v867
        %s934 = sand.u32 %s116, 1
        %s935 = scalar_lea.sflag [#allocation4], %s934
        %s936 = sand.u32 %s116, 1
        %s937 = smul.addr %s936, 512
        %s938 = scalar_lea.vmem [#allocation7], %s937
        // Predicated region
        $region41: #{tpu_custom_call.1} parent=31 // pred_check
          %p939 = pneg %p126
        $region42: #{tpu_custom_call.1} parent=31 // pred_check_branch
          %941 = sbr.rel (%p939) target = $region44
        $region43: #{tpu_custom_call.1} parent=31 // pred_region
          %s942 = smul.u32 64, %s24
          %s944 = ssub.s32 8192, 8192
          %945 = vsyncadd %s935, %s944
          %s946 = smul.addr %s23, 1024
          %s947 = sadd.s32 %s942, %s946
          %s948 = smul.addr %s947, 128
          %s949 = scalar_lea.hbm %s3, %s948
          %s950 = sshll.u32 %s938, 4
          %s951 = int_to_ptr.vmem [resolvable:$true] %s950
          %956 = dma.vmem_to_hbm [thread:$0]  %s951, 8192, %s949, %s935, 128, 128, 8
        $region44: #{tpu_custom_call.1} parent=31 // pred_fallthru
          _
      $region32: #{tpu_custom_call.1} parent=5 // pred_fallthru
        _
      %p957 = scmp.le.s32.totalorder 2, %s14
      // Predicated region
      $region45: #{tpu_custom_call.1} parent=5 // pred_check
        %p958 = pneg %p957
      $region46: #{tpu_custom_call.1} parent=5 // pred_check_branch
        %960 = sbr.rel (%p958) target = $region48
      $region47: #{tpu_custom_call.1} parent=5 // pred_region
        %s961 = ssub.s32 %s14, 2
        // Predicated region
        $region49: #{tpu_custom_call.1} parent=47 // pred_check
          %p962 = pneg %p132
        $region50: #{tpu_custom_call.1} parent=47 // pred_check_branch
          %964 = sbr.rel (%p962) target = $region52
        $region51: #{tpu_custom_call.1} parent=47 // pred_region
          %s965 = sand.u32 %s117, 1
          %s966 = scalar_lea.sflag [#allocation4], %s965
          %s967 = sand.u32 %s117, 1
          %s968 = smul.addr %s967, 512
          %s969 = scalar_lea.vmem [#allocation7], %s968
          %970 = dma.done %s966, 8192
        $region52: #{tpu_custom_call.1} parent=47 // pred_fallthru
          _
      $region48: #{tpu_custom_call.1} parent=5 // pred_fallthru
        _
    $region6: #{tpu_custom_call.1} parent=1 // loop_footer
      %s18 = sadd.s32 1, %s14
    $region7: #{tpu_custom_call.1} parent=1 // loop_footer_branch
      %13 = sbr.rel target = $region3
    $region8: #{tpu_custom_call.1} parent=1 // loop_exit
      _
    %971 = vsyncpa [#allocation3], 1
    %s972 = scalar_lea.sflag [#allocation3], 1
    %973 = vsyncpa %s972, 1
    %974 = vsyncpa [#allocation6], 1
    %975 = vsyncpa [#allocation4], 1
    %s976 = scalar_lea.sflag [#allocation4], 1
    %977 = vsyncpa %s976, 1

</llo_original>
